<compile_context>
chip_gen: v6e
topology: v6e:2x2x1
jax: 0.10.0
libtpu: 0.0.40
codegen_flags: <defaults>
</compile_context>

<pallas_src>
import functools

import jax
import jax.numpy as jnp
from jax.experimental import pallas as pl
from jax.experimental.pallas import tpu as pltpu


def _pw_conv_bias_kernel(x_ref, w_ref, b_ref, o_ref):
    # x_ref: (nb, C_in, tile_hw)   -- pixels on the lane axis
    # w_ref: (tile_co, C_in)       -- resident across the whole grid when n_co==1
    # b_ref: (tile_co, 1)          -- f32, cast hoisted to the wrapper
    # o_ref: (nb, tile_co, tile_hw)
    w = w_ref[...]
    b = b_ref[...]
    for i in range(x_ref.shape[0]):          # nb is small and static
        acc = jnp.dot(w, x_ref[i], preferred_element_type=jnp.float32)
        o_ref[i] = (acc + b).astype(o_ref.dtype)


def _pw_conv_nobias_kernel(x_ref, w_ref, o_ref):
    w = w_ref[...]
    for i in range(x_ref.shape[0]):
        acc = jnp.dot(w, x_ref[i], preferred_element_type=jnp.float32)
        o_ref[i] = acc.astype(o_ref.dtype)


def _vmem_capacity_bytes():
    try:
        return int(pltpu.get_tpu_info().vmem_capacity_bytes)
    except Exception:
        return 64 << 20  # conservative default (v7x per-TensorCore VMEM)


def _choose_tiles(N, HW, C_in, C_out, c_bytes, o_bytes, vmem_bytes):
    """Pick (nb, tile_hw, tile_co) under a generation-aware VMEM budget."""
    small_vmem = vmem_bytes <= (64 << 20)

    # --- C_out tile: keep the whole weight resident whenever it fits. ---
    w_budget = (8 << 20) if small_vmem else (16 << 20)   # double-buffered weight
    if 2 * C_out * C_in * c_bytes <= w_budget:
        tile_co = C_out                                  # W DMA'd once, x streamed once
    else:
        tile_co = 256 if C_out >= 256 else C_out         # MXU-friendly fallback

    # --- pixel (lane) tile: fatter steps on faster-HBM / bigger-VMEM parts. ---
    blk_budget = (4 << 20) if small_vmem else (8 << 20)  # x + out + f32 acc per step
    lane_cap = 4096 if small_vmem else 8192
    per_lane = C_in * c_bytes + tile_co * o_bytes + tile_co * 4
    t = blk_budget // max(1, per_lane)
    t = max(128, (t // 128) * 128)
    t = min(t, lane_cap)
    tile_hw = HW if HW <= t else t

    # --- batch blocking for small-spatial layers (keep >= ~2 MiB per step). ---
    nb = 1
    if HW == tile_hw and N > 1:
        step_bytes = (C_in * c_bytes + tile_co * o_bytes) * tile_hw
        min_step = 2 << 20
        if step_bytes < min_step:
            nb = min(N, max(1, min_step // max(1, step_bytes)))
            nb = min(nb, max(1, blk_budget // max(1, per_lane * tile_hw)))
    return nb, tile_hw, tile_co


@functools.partial(jax.jit, static_argnames=("compute_dtype",))
def pointwise_conv2d(x_nchw, weight, bias=None, *, compute_dtype=None):
    """1x1 conv, semantics of nn.Conv2d(kernel=1, stride=1, pad=0, groups=1).

    x_nchw: (N, C_in, H, W)
    weight: (C_out, C_in, 1, 1)   (PyTorch layout)
    bias:   (C_out,) or None
    compute_dtype: optional low-precision dtype (e.g. jnp.bfloat16) for the
        matmul operands; accumulation and bias add stay f32, output keeps the
        input dtype.  Default promotes x/weight dtypes (exact nn.Conv2d match
        for the all-f32 case).
    returns (N, C_out, H, W) in x_nchw.dtype
    """
    N, C_in, H, W = x_nchw.shape
    C_out = weight.shape[0]
    HW = H * W
    out_dtype = x_nchw.dtype
    if compute_dtype is None:
        compute_dtype = jnp.result_type(x_nchw.dtype, weight.dtype)
    compute_dtype = jnp.dtype(compute_dtype)
    c_bytes = compute_dtype.itemsize
    o_bytes = jnp.dtype(out_dtype).itemsize

    # Free (contiguous) reshapes / hoisted casts only -- no HBM transposes.
    x_3d = x_nchw.reshape(N, C_in, HW).astype(compute_dtype)     # (N, C_in, HW)
    w_oc = weight.reshape(C_out, C_in).astype(compute_dtype)     # (C_out, C_in)
    has_bias = bias is not None

    vmem_bytes = _vmem_capacity_bytes()
    nb, tile_hw, tile_co = _choose_tiles(N, HW, C_in, C_out,
                                         c_bytes, o_bytes, vmem_bytes)
    n_b = pl.cdiv(N, nb)
    n_hw = pl.cdiv(HW, tile_hw)
    n_co = pl.cdiv(C_out, tile_co)

    # VMEM footprint: double-buffered x / W / bias / out + the f32 accumulator.
    block_bytes = (2 * nb * C_in * tile_hw * c_bytes
                   + 2 * tile_co * C_in * c_bytes
                   + (2 * tile_co * 4 if has_bias else 0)
                   + 2 * nb * tile_co * tile_hw * o_bytes
                   + nb * tile_co * tile_hw * 4)
    vmem_cap = (vmem_bytes * 7) // 8                 # never pin at 100% of physical
    vmem_limit = int(min(max(block_bytes + (8 << 20), 32 << 20), vmem_cap))

    # Real DMA traffic: x streamed once (co innermost, x block index invariant
    # across it -> DMA elided); W re-fetched per (n, hw) only when C_out tiled.
    w_reads = 1 if n_co == 1 else n_b * n_hw
    cost = pl.CostEstimate(
        flops=2 * N * HW * C_in * C_out,
        transcendentals=0,
        bytes_accessed=(N * HW * C_in * c_bytes
                        + w_reads * C_out * C_in * c_bytes
                        + N * HW * C_out * o_bytes
                        + (4 * C_out if has_bias else 0)),
    )

    # Grid order (N, hw, co): co innermost keeps the x block resident.
    x_spec = pl.BlockSpec((nb, C_in, tile_hw), lambda n, hw, co: (n, 0, hw))
    w_spec = pl.BlockSpec((tile_co, C_in), lambda n, hw, co: (co, 0))
    out_spec = pl.BlockSpec((nb, tile_co, tile_hw), lambda n, hw, co: (n, co, hw))

    if has_bias:
        b_f32 = bias.reshape(C_out, 1).astype(jnp.float32)       # hoisted cast
        kernel = _pw_conv_bias_kernel
        in_specs = [x_spec, w_spec,
                    pl.BlockSpec((tile_co, 1), lambda n, hw, co: (co, 0))]
        args = (x_3d, w_oc, b_f32)
    else:
        kernel = _pw_conv_nobias_kernel
        in_specs = [x_spec, w_spec]
        args = (x_3d, w_oc)

    out_3d = pl.pallas_call(
        kernel,
        out_shape=jax.ShapeDtypeStruct((N, C_out, HW), out_dtype),
        grid_spec=pltpu.PrefetchScalarGridSpec(
            num_scalar_prefetch=0,
            grid=(n_b, n_hw, n_co),
            in_specs=in_specs,
            out_specs=out_spec,
        ),
        compiler_params=pltpu.CompilerParams(
            # Megacore (v7x) shards along batch / pixels, never along C_out.
            dimension_semantics=("parallel", "parallel", "arbitrary"),
            vmem_limit_bytes=vmem_limit,
        ),
        cost_estimate=cost,
    )(*args)

    # Free reshape back to (N, C_out, H, W) -- already channel-major.
    return out_3d.reshape(N, C_out, H, W)


if __name__ == "__main__":
    # Small shapes consistent with the module's forward: NCHW input.
    N, C_in, C_out, Hs, Ws = 2, 4, 8, 16, 16

    key = jax.random.PRNGKey(0)
    kx, kw, kb = jax.random.split(key, 3)

    x = jax.random.normal(kx, (N, C_in, Hs, Ws), dtype=jnp.float32)
    # Deterministic synthetic params (PyTorch Conv2d shapes).
    weight = jax.random.normal(kw, (C_out, C_in, 1, 1), dtype=jnp.float32) * 0.1
    bias = jax.random.normal(kb, (C_out,), dtype=jnp.float32) * 0.1

    out = jax.block_until_ready(pointwise_conv2d(x, weight, bias))
    out_nobias = jax.block_until_ready(pointwise_conv2d(x, weight, None))

    # Reference check in plain JAX (same math, no Pallas).
    w2d = weight.reshape(C_out, C_in)
    ref = jnp.einsum("nchw,oc->nohw", x, w2d) + bias[None, :, None, None]
    ref_nobias = jnp.einsum("nchw,oc->nohw", x, w2d)

    assert out.shape == (N, C_out, Hs, Ws)
    assert jnp.allclose(out, ref, atol=1e-5, rtol=1e-5)
    assert out_nobias.shape == (N, C_out, Hs, Ws)
    assert jnp.allclose(out_nobias, ref_nobias, atol=1e-5, rtol=1e-5)

    print("KERNEL_OK")
</pallas_src>

<mosaic_0001>
module attributes {stable_mosaic.version = 11 : i64} {
  func.func @_pw_conv_bias_kernel(%arg0: i32, %arg1: i32, %arg2: i32, %arg3: memref<2x4x256xf32, #tpu.memory_space<vmem>>, %arg4: memref<8x4xf32, #tpu.memory_space<vmem>>, %arg5: memref<8x1xf32, #tpu.memory_space<vmem>>, %arg6: memref<2x8x256xf32, #tpu.memory_space<vmem>>) attributes {dimension_semantics = [#tpu.dimension_semantics<parallel>, #tpu.dimension_semantics<parallel>, #tpu.dimension_semantics<arbitrary>], iteration_bounds = array<i64: 1, 1, 1>, scalar_prefetch = 0 : i64, scratch_operands = 0 : i64, tpu.core_type = #tpu.core_type<tc>, window_params = [{transform_indices = @transform_0, window_bounds = array<i64: 2, 4, 256>}, {transform_indices = @transform_1, window_bounds = array<i64: 8, 4>}, {transform_indices = @transform_2, window_bounds = array<i64: 8, 1>}, {transform_indices = @transform_3, window_bounds = array<i64: 2, 8, 256>}]} {
    %c0 = arith.constant 0 : index
    %c0_0 = arith.constant 0 : index
    %0 = vector.load %arg4[%c0, %c0_0] : memref<8x4xf32, #tpu.memory_space<vmem>>, vector<8x4xf32>
    %c0_1 = arith.constant 0 : index
    %c0_2 = arith.constant 0 : index
    %1 = vector.load %arg5[%c0_1, %c0_2] : memref<8x1xf32, #tpu.memory_space<vmem>>, vector<8x1xf32>
    %c0_3 = arith.constant 0 : index
    %c0_4 = arith.constant 0 : index
    %c0_5 = arith.constant 0 : index
    %2 = vector.load %arg3[%c0_3, %c0_4, %c0_5] : memref<2x4x256xf32, #tpu.memory_space<vmem>>, vector<1x4x256xf32>
    %3 = vector.shape_cast %2 : vector<1x4x256xf32> to vector<4x256xf32>
    %cst = arith.constant dense<0.000000e+00> : vector<8x256xf32>
    %4 = tpu.matmul %0, %3, %cst {dimension_numbers = #tpu.dot_dimension_numbers<[1], [0], [0], [1], [0, 0, 1, 1], [], []>} : vector<8x4xf32>, vector<4x256xf32>, vector<8x256xf32> -> vector<8x256xf32>
    %5 = vector.broadcast %1 : vector<8x1xf32> to vector<8x256xf32>
    %6 = arith.addf %4, %5 : vector<8x256xf32>
    %c0_6 = arith.constant 0 : index
    %c0_7 = arith.constant 0 : index
    %c0_8 = arith.constant 0 : index
    %7 = vector.load %arg6[%c0_6, %c0_7, %c0_8] : memref<2x8x256xf32, #tpu.memory_space<vmem>>, vector<1x8x256xf32>
    %8 = vector.shape_cast %7 : vector<1x8x256xf32> to vector<8x256xf32>
    %9 = vector.shape_cast %6 : vector<8x256xf32> to vector<1x8x256xf32>
    tpu.vector_store %arg6[%c0_6, %c0_7, %c0_8], %9 {strides = array<i32>} : memref<2x8x256xf32, #tpu.memory_space<vmem>>, vector<1x8x256xf32>,
    %c1 = arith.constant 1 : index
    %c0_9 = arith.constant 0 : index
    %c0_10 = arith.constant 0 : index
    %10 = vector.load %arg3[%c1, %c0_9, %c0_10] : memref<2x4x256xf32, #tpu.memory_space<vmem>>, vector<1x4x256xf32>
    %11 = vector.shape_cast %10 : vector<1x4x256xf32> to vector<4x256xf32>
    %cst_11 = arith.constant dense<0.000000e+00> : vector<8x256xf32>
    %12 = tpu.matmul %0, %11, %cst_11 {dimension_numbers = #tpu.dot_dimension_numbers<[1], [0], [0], [1], [0, 0, 1, 1], [], []>} : vector<8x4xf32>, vector<4x256xf32>, vector<8x256xf32> -> vector<8x256xf32>
    %13 = vector.broadcast %1 : vector<8x1xf32> to vector<8x256xf32>
    %14 = arith.addf %12, %13 : vector<8x256xf32>
    %c1_12 = arith.constant 1 : index
    %c0_13 = arith.constant 0 : index
    %c0_14 = arith.constant 0 : index
    %15 = vector.load %arg6[%c1_12, %c0_13, %c0_14] : memref<2x8x256xf32, #tpu.memory_space<vmem>>, vector<1x8x256xf32>
    %16 = vector.shape_cast %15 : vector<1x8x256xf32> to vector<8x256xf32>
    %17 = vector.shape_cast %14 : vector<8x256xf32> to vector<1x8x256xf32>
    tpu.vector_store %arg6[%c1_12, %c0_13, %c0_14], %17 {strides = array<i32>} : memref<2x8x256xf32, #tpu.memory_space<vmem>>, vector<1x8x256xf32>,
    return
  }
  func.func @transform_0(%arg0: i32, %arg1: i32, %arg2: i32) -> (i32, i32, i32) {
    %c0_i32 = arith.constant 0 : i32
    %c0_i32_0 = arith.constant 0 : i32
    return %arg0, %c0_i32, %arg1 : i32, i32, i32
  }
  func.func @transform_1(%arg0: i32, %arg1: i32, %arg2: i32) -> (i32, i32) {
    %c0_i32 = arith.constant 0 : i32
    %c0_i32_0 = arith.constant 0 : i32
    return %arg2, %c0_i32 : i32, i32
  }
  func.func @transform_2(%arg0: i32, %arg1: i32, %arg2: i32) -> (i32, i32) {
    %c0_i32 = arith.constant 0 : i32
    %c0_i32_0 = arith.constant 0 : i32
    return %arg2, %c0_i32 : i32, i32
  }
  func.func @transform_3(%arg0: i32, %arg1: i32, %arg2: i32) -> (i32, i32, i32) {
    %c0_i32 = arith.constant 0 : i32
    return %arg0, %arg2, %arg1 : i32, i32, i32
  }
}

</mosaic_0001>

<llo_original>
// kernel: pointwise_conv2d.1
$region0: #{pointwise_conv2d.1}
  #allocation0 [shape = 'u32[]', space=smem, size = 0x4, offset = 0x4, fixed_abs, tag = 'smem constant byte address 0x4 - core index']
  #allocation1 [shape = 'u32[144,128]{1,0:T(1,128)}', space=vmem, size = 0x12000, scoped, tag = 'internal scratch']
  %s0 = inlined_call_operand.vmem [shape: f32[2,4,256], index: 0, kind: input, shape index: {}]
  %s1 = inlined_call_operand.vmem [shape: f32[8,4], index: 1, kind: input, shape index: {}]
  %s2 = inlined_call_operand.vmem [shape: f32[8,1], index: 2, kind: input, shape index: {}]
  %s3 = inlined_call_operand.vmem [shape: f32[2,8,256], index: 3, kind: output, shape index: {}]
  %s4 = sld [smem:[#allocation0]]
  $region22: #{pointwise_conv2d.1} parent=0
    _
  %s6 = ssub.s32 1, %s4
  %s7 = scalar_select 0, %s6, %s4
  // Predicated region
  $region2: #{pointwise_conv2d.1} parent=0 // pred_check
    _
  $region3: #{pointwise_conv2d.1} parent=0 // pred_check_branch
    %9 = sbr.rel (0) target = $region5
  $region4: #{pointwise_conv2d.1} parent=0 // pred_region
    _
  $region5: #{pointwise_conv2d.1} parent=0 // pred_fallthru
    _
  // Predicated region
  $region6: #{pointwise_conv2d.1} parent=0 // pred_check
    _
  $region7: #{pointwise_conv2d.1} parent=0 // pred_check_branch
    %11 = sbr.rel (0) target = $region9
  $region8: #{pointwise_conv2d.1} parent=0 // pred_region
    _
  $region9: #{pointwise_conv2d.1} parent=0 // pred_fallthru
    _
  // Predicated region
  $region10: #{pointwise_conv2d.1} parent=0 // pred_check
    _
  $region11: #{pointwise_conv2d.1} parent=0 // pred_check_branch
    %13 = sbr.rel (0) target = $region13
  $region12: #{pointwise_conv2d.1} parent=0 // pred_region
    _
  $region13: #{pointwise_conv2d.1} parent=0 // pred_fallthru
    _
  %v14 = vld [vmem:[%s1] sm:$0xff]
  %v15 = vld [vmem:[%s2] sm:$0xff]
  %v16 = vld [vmem:[%s0] sm:$0xff]
  %18 = vset.pattern.permute.xlu0 0
  %19 = vperm.xlu0 %18, %v15
  %v20 = vpop.permute.xlu0 %19
  %v23 = vcombine.high %v16, %v16
  %vm24 = vcmask 31744
  %v26 = vsel %vm24, %v14, 0
  %vm28 = vcmask 1043456
  %v29 = vsel %vm28, %v16, 0
  %v31 = vsel %vm28, %v23, 0
  %33 = vmatprep.subr.mxu0 0.0
  %34 = vmatpush1.msra.mxu0 0.0
  %35 = vmatprep.subr.mxu0 0.0
  %36 = vmatpush1.msra.mxu0 0.0
  %37 = vmatprep.subr.mxu0 0.0
  %38 = vmatpush1.msra.mxu0 0.0
  %39 = vmatprep.subr.mxu0 0.0
  %40 = vmatpush1.msra.mxu0 0.0
  %41 = vmatprep.subr.mxu0 0.0
  %42 = vmatpush1.msra.mxu0 0.0
  %43 = vmatprep.subr.mxu0 0.0
  %44 = vmatpush1.msra.mxu0 0.0
  %45 = vmatprep.subr.mxu0 0.0
  %46 = vmatpush1.msra.mxu0 0.0
  %47 = vmatprep.subr.mxu0 0.0
  %48 = vmatpush1.msra.mxu0 0.0
  %49 = vmatprep.subr.mxu0 0.0
  %50 = vmatpush1.msra.mxu0 0.0
  %51 = vmatprep.subr.mxu0 0.0
  %52 = vmatpush1.msra.mxu0 0.0
  %53 = vmatprep.subr.mxu0 0.0
  %54 = vmatpush1.msra.mxu0 0.0
  %55 = vmatprep.subr.mxu0 0.0
  %56 = vmatpush1.msra.mxu0 0.0
  %57 = vmatprep.subr.mxu0 0.0
  %58 = vmatpush1.msra.mxu0 0.0
  %59 = vmatprep.subr.mxu0 0.0
  %60 = vmatpush1.msra.mxu0 0.0
  %61 = vmatprep.subr.mxu0 0.0
  %62 = vmatpush1.msra.mxu0 0.0
  %63 = vmatprep.subr.mxu0 %v31
  %64 = vmatpush1.msra.mxu0 %v29
  %65 = vmatprep.subr.mxu0 0.0
  %66 = vmatpush2.msra.mxu0 0.0
  %67 = vmatprep.subr.mxu0 0.0
  %68 = vmatpush2.msra.mxu0 0.0
  %69 = vmatprep.subr.mxu0 0.0
  %70 = vmatpush2.msra.mxu0 0.0
  %71 = vmatprep.subr.mxu0 0.0
  %72 = vmatpush2.msra.mxu0 0.0
  %73 = vmatprep.subr.mxu0 0.0
  %74 = vmatpush2.msra.mxu0 0.0
  %75 = vmatprep.subr.mxu0 0.0
  %76 = vmatpush2.msra.mxu0 0.0
  %77 = vmatprep.subr.mxu0 0.0
  %78 = vmatpush2.msra.mxu0 0.0
  %79 = vmatprep.subr.mxu0 0.0
  %80 = vmatpush2.msra.mxu0 0.0
  %81 = vmatprep.subr.mxu0 0.0
  %82 = vmatpush2.msra.mxu0 0.0
  %83 = vmatprep.subr.mxu0 0.0
  %84 = vmatpush2.msra.mxu0 0.0
  %85 = vmatprep.subr.mxu0 0.0
  %86 = vmatpush2.msra.mxu0 0.0
  %87 = vmatprep.subr.mxu0 0.0
  %88 = vmatpush2.msra.mxu0 0.0
  %89 = vmatprep.subr.mxu0 0.0
  %90 = vmatpush2.msra.mxu0 0.0
  %91 = vmatprep.subr.mxu0 0.0
  %92 = vmatpush2.msra.mxu0 0.0
  %93 = vmatprep.subr.mxu0 0.0
  %94 = vmatpush2.msra.mxu0 0.0
  %95 = vmatprep.subr.mxu0 0.0
  %96 = vmatpush2.msra.mxu0 0.0
  %97 = vmatprep.mubr.f32.mxu0 0.0
  %98 = vmatmul.mubr.f32.gmra.mxu0 %v26
  %v99 = vpop.f32.mrf.mxu0
  %v100 = vadd.f32 %v20, %v99
  %v101 = vpop.f32.mrf.mxu0
  %v102 = vadd.f32 %v20, %v101
  %103 = vdwg.mxu0
  %104 = vst [vmem:[%s3] sm:$0xff] %v100
  %105 = vst [vmem:[%s3 + $0x8] sm:$0xff] %v102
  %s106 = scalar_lea.vmem %s0, 8
  %v107 = vld [vmem:[%s106] sm:$0xff]
  %v109 = vcombine.high %v107, %v107
  %v110 = vsel %vm28, %v107, 0
  %v112 = vsel %vm28, %v109, 0
  %114 = vmatprep.subr.mxu0 0.0
  %115 = vmatpush1.msra.mxu0 0.0
  %116 = vmatprep.subr.mxu0 0.0
  %117 = vmatpush1.msra.mxu0 0.0
  %118 = vmatprep.subr.mxu0 0.0
  %119 = vmatpush1.msra.mxu0 0.0
  %120 = vmatprep.subr.mxu0 0.0
  %121 = vmatpush1.msra.mxu0 0.0
  %122 = vmatprep.subr.mxu0 0.0
  %123 = vmatpush1.msra.mxu0 0.0
  %124 = vmatprep.subr.mxu0 0.0
  %125 = vmatpush1.msra.mxu0 0.0
  %126 = vmatprep.subr.mxu0 0.0
  %127 = vmatpush1.msra.mxu0 0.0
  %128 = vmatprep.subr.mxu0 0.0
  %129 = vmatpush1.msra.mxu0 0.0
  %130 = vmatprep.subr.mxu0 0.0
  %131 = vmatpush1.msra.mxu0 0.0
  %132 = vmatprep.subr.mxu0 0.0
  %133 = vmatpush1.msra.mxu0 0.0
  %134 = vmatprep.subr.mxu0 0.0
  %135 = vmatpush1.msra.mxu0 0.0
  %136 = vmatprep.subr.mxu0 0.0
  %137 = vmatpush1.msra.mxu0 0.0
  %138 = vmatprep.subr.mxu0 0.0
  %139 = vmatpush1.msra.mxu0 0.0
  %140 = vmatprep.subr.mxu0 0.0
  %141 = vmatpush1.msra.mxu0 0.0
  %142 = vmatprep.subr.mxu0 0.0
  %143 = vmatpush1.msra.mxu0 0.0
  %144 = vmatprep.subr.mxu0 %v112
  %145 = vmatpush1.msra.mxu0 %v110
  %146 = vmatprep.subr.mxu0 0.0
  %147 = vmatpush2.msra.mxu0 0.0
  %148 = vmatprep.subr.mxu0 0.0
  %149 = vmatpush2.msra.mxu0 0.0
  %150 = vmatprep.subr.mxu0 0.0
  %151 = vmatpush2.msra.mxu0 0.0
  %152 = vmatprep.subr.mxu0 0.0
  %153 = vmatpush2.msra.mxu0 0.0
  %154 = vmatprep.subr.mxu0 0.0
  %155 = vmatpush2.msra.mxu0 0.0
  %156 = vmatprep.subr.mxu0 0.0
  %157 = vmatpush2.msra.mxu0 0.0
  %158 = vmatprep.subr.mxu0 0.0
  %159 = vmatpush2.msra.mxu0 0.0
  %160 = vmatprep.subr.mxu0 0.0
  %161 = vmatpush2.msra.mxu0 0.0
  %162 = vmatprep.subr.mxu0 0.0
  %163 = vmatpush2.msra.mxu0 0.0
  %164 = vmatprep.subr.mxu0 0.0
  %165 = vmatpush2.msra.mxu0 0.0
  %166 = vmatprep.subr.mxu0 0.0
  %167 = vmatpush2.msra.mxu0 0.0
  %168 = vmatprep.subr.mxu0 0.0
  %169 = vmatpush2.msra.mxu0 0.0
  %170 = vmatprep.subr.mxu0 0.0
  %171 = vmatpush2.msra.mxu0 0.0
  %172 = vmatprep.subr.mxu0 0.0
  %173 = vmatpush2.msra.mxu0 0.0
  %174 = vmatprep.subr.mxu0 0.0
  %175 = vmatpush2.msra.mxu0 0.0
  %176 = vmatprep.subr.mxu0 0.0
  %177 = vmatpush2.msra.mxu0 0.0
  %178 = vmatprep.mubr.f32.mxu0 0.0
  %179 = vmatmul.mubr.f32.gmra.mxu0 %v26
  %v180 = vpop.f32.mrf.mxu0
  %v181 = vadd.f32 %v20, %v180
  %v182 = vpop.f32.mrf.mxu0
  %v183 = vadd.f32 %v20, %v182
  %184 = vdwg.mxu0
  %s185 = scalar_lea.vmem %s3, 16
  %186 = vst [vmem:[%s185] sm:$0xff] %v181
  %187 = vst [vmem:[%s185 + $0x8] sm:$0xff] %v183
  // Predicated region
  $region14: #{pointwise_conv2d.1} parent=0 // pred_check
    _
  $region15: #{pointwise_conv2d.1} parent=0 // pred_check_branch
    %189 = sbr.rel (0) target = $region17
  $region16: #{pointwise_conv2d.1} parent=0 // pred_region
    _
  $region17: #{pointwise_conv2d.1} parent=0 // pred_fallthru
    _
  // Predicated region
  $region18: #{pointwise_conv2d.1} parent=0 // pred_check
    _
  $region19: #{pointwise_conv2d.1} parent=0 // pred_check_branch
    %191 = sbr.rel (0) target = $region21
  $region20: #{pointwise_conv2d.1} parent=0 // pred_region
    _
  $region21: #{pointwise_conv2d.1} parent=0 // pred_fallthru
    _

</llo_original>
